<compile_context>
chip_gen: v7x
topology: tpu7x:2x2x1
jax: 0.10.0
libtpu: 0.0.40
codegen_flags: <defaults>
</compile_context>

<pallas_src>
import jax
import jax.numpy as jnp
from jax import lax
from jax.experimental import pallas as pl
from jax.experimental.pallas import tpu as pltpu


def _global_attn_kernel(q_ref, m_ref, w_ref, attn_ref, *align_refs):
    # q_ref:      (BB, TQ, D)  query tile (BB batches, TQ target rows)
    # m_ref:      (BB, S,  D)  memory bank (full source length)
    # w_ref:      (D, 2D)      linear_out weight, PyTorch [out_feat, in_feat]
    # attn_ref:   (TQ, BB*D)   attn_h slab, per-batch D-columns on the lane axis
    # align_refs: optionally ((TQ, BB*S),) attention distribution slab (f32)
    BB, TQ, D = q_ref.shape
    S = m_ref.shape[1]

    q = q_ref[...]                                   # native dtype -> MXU
    m = m_ref[...]

    # score(H_j, q) = H_j^T q : contraction over D of both operands (the MXU
    # consumes the transposed-RHS form directly; no materialized m^T).
    scores = jnp.einsum("btd,bsd->bts", q, m,
                        preferred_element_type=jnp.float32)        # (BB,TQ,S)

    # Numerically stable, *exact* softmax over the source axis (f32).  The
    # distribution is returned to the caller, so no approximate reciprocal.
    s_max = jnp.max(scores, axis=-1, keepdims=True)
    p = jnp.exp(scores - s_max)
    denom = jnp.sum(p, axis=-1, keepdims=True)
    probs = p / denom                                              # (BB,TQ,S)

    # c = align @ memory_bank (MXU-native operands, f32 accumulation).
    ctx = jnp.einsum("bts,bsd->btd", probs.astype(m.dtype), m,
                     preferred_element_type=jnp.float32)           # (BB,TQ,D)

    # attn_h = tanh([c, q] @ W_out^T) WITHOUT the (BB,TQ,2D) concat: split
    # W_out = [W_c | W_q] statically and sum two matmuls.  The batch is folded
    # into the row axis so the weight stays latched in the MXU for one big
    # (BB*TQ, D) x (D, D)^T matmul per half, and tanh runs once on the EUP.
    w_c = w_ref[:, :D]                                             # (D, D)
    w_q = w_ref[:, D:]                                             # (D, D)
    ctx2 = ctx.astype(w_c.dtype).reshape(BB * TQ, D)
    q2 = q.astype(w_q.dtype).reshape(BB * TQ, D)
    dn = (((1,), (1,)), ((), ()))          # contract in_features:  x @ W^T
    pre = (lax.dot_general(ctx2, w_c, dn, preferred_element_type=jnp.float32)
           + lax.dot_general(q2, w_q, dn, preferred_element_type=jnp.float32))
    h = jnp.tanh(pre)                                              # (BB*TQ, D)

    # Direct per-batch column-slab stores (no concatenated temporaries).
    # Row t, cols [b*D,(b+1)*D) of the (T, B*D) output is exactly element
    # (t, b, :) of the final [T, B, D] result, so the wrapper reshape is free.
    for b in range(BB):                    # BB is static -> unrolled at trace
        attn_ref[:, b * D:(b + 1) * D] = (
            h[b * TQ:(b + 1) * TQ, :].astype(attn_ref.dtype))
    if align_refs:
        align_ref, = align_refs
        for b in range(BB):
            align_ref[:, b * S:(b + 1) * S] = probs[b].astype(align_ref.dtype)


def _maybe_single_buffered(block_shape, index_map):
    """BlockSpec for a block whose index_map is constant over the whole grid.

    Such a block is never re-fetched, so default double-buffering only wastes
    VMEM; request a single pipeline buffer.  Falls back to a plain BlockSpec on
    Pallas versions without pipeline_mode / Buffered(1) support.
    """
    try:
        return pl.BlockSpec(block_shape, index_map,
                            pipeline_mode=pl.Buffered(1))
    except Exception:
        return pl.BlockSpec(block_shape, index_map)


def global_attention_dot(query, memory_bank, w_out, *, return_align=True):
    """GlobalAttention(dim, attn_type='dot').forward (no mask / coverage).

    Args:
      query:       [B, T, D]  target-side queries
      memory_bank: [B, S, D]  source-side memory bank
      w_out:       [D, 2*D]   nn.Linear(dim*2, dim, bias=False).weight
      return_align: also return the attention distribution.  Skipping it saves
        the (T, B*S) f32 writeback, which dominates HBM traffic when S >> D.

    Returns:
      attn_h:        [T, B, D]  (query dtype)
      align_vectors: [T, B, S]  (float32), or None if return_align=False
    """
    B, T, D = query.shape
    Bm, S, Dm = memory_bank.shape
    assert B == Bm and D == Dm
    assert w_out.shape == (D, 2 * D)

    # Target-length tile: whole T for small problems, 256-row tiles otherwise
    # (multiple of both the v6e/v7x 256-high MXU and the v5e 128-high MXU).
    TQ = T if T <= 256 else 256
    nt = pl.cdiv(T, TQ)

    # Batch tile.  Normally the whole batch is folded into each grid step (so
    # tiny shapes amortize the ~0.35us/step overhead and the MXU sees bigger
    # tiles).  When the target length yields only a single tile, split the
    # batch in two so v7x's second TensorCore gets a 'parallel' grid step --
    # but only when the per-step output slabs stay 128-lane aligned (otherwise
    # the BlockSpec would violate the (8,128) rule / produce masked stores).
    BB = B
    if nt == 1 and B >= 2 and B % 2 == 0:
        half = B // 2
        if (half * D) % 128 == 0 and (half * S) % 128 == 0:
            BB = half
    nb = B // BB

    # --- block specs --------------------------------------------------------
    q_spec = pl.BlockSpec((BB, TQ, D), lambda b, t: (b, t, 0))
    if nb == 1:
        # Constant index map -> never re-fetched -> single-buffer it.
        m_spec = _maybe_single_buffered((BB, S, D), lambda b, t: (0, 0, 0))
    else:
        # Changes with b (t is the inner grid axis, so no re-fetch across t).
        m_spec = pl.BlockSpec((BB, S, D), lambda b, t: (b, 0, 0))
    w_spec = _maybe_single_buffered((D, 2 * D), lambda b, t: (0, 0))

    out_shape = [jax.ShapeDtypeStruct((T, B * D), query.dtype)]
    out_specs = [pl.BlockSpec((TQ, BB * D), lambda b, t: (t, b))]
    if return_align:
        out_shape.append(jax.ShapeDtypeStruct((T, B * S), jnp.float32))
        out_specs.append(pl.BlockSpec((TQ, BB * S), lambda b, t: (t, b)))

    # --- explicit VMEM budget (default scoped limit is only 16/32 MiB) -------
    qsz = jnp.dtype(query.dtype).itemsize
    msz = jnp.dtype(memory_bank.dtype).itemsize
    wsz = jnp.dtype(w_out.dtype).itemsize
    est = (2 * BB * TQ * D * qsz                         # query block (2 bufs)
           + (1 if nb == 1 else 2) * BB * S * D * msz    # memory bank block
           + D * 2 * D * wsz                             # weight (1 buf)
           + 2 * TQ * BB * D * qsz                       # attn out block
           + (2 * TQ * BB * S * 4 if return_align else 0)  # align out block
           + 2 * BB * TQ * S * 4                         # scores + probs (f32)
           + 3 * BB * TQ * D * 4)                        # ctx / pre-act / tanh
    vmem_limit = int(min(max(est * 3 // 2, 32 * 1024 * 1024),
                         100 * 1024 * 1024))

    outs = pl.pallas_call(
        _global_attn_kernel,
        out_shape=tuple(out_shape),
        grid_spec=pltpu.PrefetchScalarGridSpec(
            num_scalar_prefetch=0,
            grid=(nb, nt),                      # t innermost: memory-bank block
            in_specs=[q_spec, m_spec, w_spec],  # only (re)fetched when b moves
            out_specs=out_specs,
        ),
        compiler_params=pltpu.CompilerParams(
            dimension_semantics=("parallel", "parallel"),
            vmem_limit_bytes=vmem_limit,
        ),
    )(query, memory_bank, w_out)

    # Trailing-dim splits of row-major arrays are layout no-ops (no transpose).
    attn_h = outs[0].reshape(T, B, D)
    if not return_align:
        return attn_h, None
    align_vectors = outs[1].reshape(T, B, S)
    return attn_h, align_vectors


def _reference(query, memory_bank, w_out):
    # Pure-JAX reference mirroring the PyTorch forward (dot attention, no mask).
    hp = jax.lax.Precision.HIGHEST
    scores = jnp.einsum("btd,bsd->bts", query, memory_bank, precision=hp)
    align = jax.nn.softmax(scores, axis=-1)
    c = jnp.einsum("bts,bsd->btd", align, memory_bank, precision=hp)
    concat = jnp.concatenate([c, query], axis=-1)
    attn_h = jnp.tanh(jnp.einsum("btk,dk->btd", concat, w_out, precision=hp))
    return jnp.transpose(attn_h, (1, 0, 2)), jnp.transpose(align, (1, 0, 2))


if __name__ == "__main__":
    B, T, S, D = 2, 8, 8, 32

    key = jax.random.PRNGKey(0)
    k1, k2, k3 = jax.random.split(key, 3)
    query = jax.random.normal(k1, (B, T, D), dtype=jnp.float32)
    memory_bank = jax.random.normal(k2, (B, S, D), dtype=jnp.float32)
    # nn.Linear(dim*2, dim, bias=False).weight has shape (dim, 2*dim)
    w_out = (jax.random.normal(k3, (D, 2 * D), dtype=jnp.float32)
             * (1.0 / jnp.sqrt(2.0 * D)))

    attn_h, align = jax.jit(global_attention_dot)(query, memory_bank, w_out)
    attn_h = jax.block_until_ready(attn_h)
    align = jax.block_until_ready(align)

    ref_attn, ref_align = _reference(query, memory_bank, w_out)
    assert attn_h.shape == (T, B, D)
    assert align.shape == (T, B, S)
    attn_err = float(jnp.max(jnp.abs(attn_h - ref_attn)))
    align_err = float(jnp.max(jnp.abs(align - ref_align)))
    assert jnp.allclose(attn_h, ref_attn, atol=2e-3, rtol=2e-3), attn_err
    assert jnp.allclose(align, ref_align, atol=2e-3, rtol=2e-3), align_err

    # Exercise the align-free fast path (skips the (T, B*S) writeback).
    attn_only, no_align = jax.jit(
        lambda q, m, w: global_attention_dot(q, m, w, return_align=False)
    )(query, memory_bank, w_out)
    attn_only = jax.block_until_ready(attn_only)
    assert no_align is None
    assert jnp.allclose(attn_only, ref_attn, atol=2e-3, rtol=2e-3)

    print("KERNEL_OK")
</pallas_src>

<mosaic_0001>
module attributes {stable_mosaic.version = 11 : i64} {
  func.func @_global_attn_kernel(%arg0: i32, %arg1: i32, %arg2: memref<2x8x32xf32, #tpu.memory_space<vmem>>, %arg3: memref<2x8x32xf32, #tpu.memory_space<vmem>>, %arg4: memref<32x64xf32, #tpu.memory_space<vmem>>, %arg5: memref<8x64xf32, #tpu.memory_space<vmem>>, %arg6: memref<8x16xf32, #tpu.memory_space<vmem>>) attributes {dimension_semantics = [#tpu.dimension_semantics<parallel>, #tpu.dimension_semantics<parallel>], iteration_bounds = array<i64: 1, 1>, scalar_prefetch = 0 : i64, scratch_operands = 0 : i64, tpu.core_type = #tpu.core_type<tc>, window_params = [{transform_indices = @transform_0, window_bounds = array<i64: 2, 8, 32>}, {pipeline_mode = #tpu.pipeline_mode<synchronous>, transform_indices = @transform_1, window_bounds = array<i64: 2, 8, 32>}, {pipeline_mode = #tpu.pipeline_mode<synchronous>, transform_indices = @transform_2, window_bounds = array<i64: 32, 64>}, {transform_indices = @transform_3, window_bounds = array<i64: 8, 64>}, {transform_indices = @transform_4, window_bounds = array<i64: 8, 16>}]} {
    %c0 = arith.constant 0 : index
    %c0_0 = arith.constant 0 : index
    %c0_1 = arith.constant 0 : index
    %0 = vector.load %arg2[%c0, %c0_0, %c0_1] : memref<2x8x32xf32, #tpu.memory_space<vmem>>, vector<2x8x32xf32>
    %c0_2 = arith.constant 0 : index
    %c0_3 = arith.constant 0 : index
    %c0_4 = arith.constant 0 : index
    %1 = vector.load %arg3[%c0_2, %c0_3, %c0_4] : memref<2x8x32xf32, #tpu.memory_space<vmem>>, vector<2x8x32xf32>
    "tpu.trace_start"() <{level = 10 : i32, message = "btd,bsd->bts"}> : () -> ()
    %cst = arith.constant dense<0.000000e+00> : vector<2x8x8xf32>
    %2 = tpu.matmul %0, %1, %cst {dimension_numbers = #tpu.dot_dimension_numbers<[2], [2], [1], [1], [0, 0, 0, 1, 1, 1], [0], [0]>} : vector<2x8x32xf32>, vector<2x8x32xf32>, vector<2x8x8xf32> -> vector<2x8x8xf32>
    "tpu.trace_stop"() : () -> ()
    %cst_5 = arith.constant dense<0xFF800000> : vector<2x8xf32>
    %3 = vector.multi_reduction <maximumf>, %2, %cst_5 [2] : vector<2x8x8xf32> to vector<2x8xf32>
    %4 = vector.shape_cast %3 : vector<2x8xf32> to vector<2x8x1xf32>
    %5 = vector.broadcast %4 : vector<2x8x1xf32> to vector<2x8x8xf32>
    %6 = arith.subf %2, %5 : vector<2x8x8xf32>
    %7 = math.exp %6 : vector<2x8x8xf32>
    %cst_6 = arith.constant dense<0.000000e+00> : vector<2x8xf32>
    %8 = vector.multi_reduction <add>, %7, %cst_6 [2] : vector<2x8x8xf32> to vector<2x8xf32>
    %9 = vector.shape_cast %8 : vector<2x8xf32> to vector<2x8x1xf32>
    %10 = vector.broadcast %9 : vector<2x8x1xf32> to vector<2x8x8xf32>
    %11 = arith.divf %7, %10 : vector<2x8x8xf32>
    "tpu.trace_start"() <{level = 10 : i32, message = "bts,bsd->btd"}> : () -> ()
    %cst_7 = arith.constant dense<0.000000e+00> : vector<2x8x32xf32>
    %12 = tpu.matmul %11, %1, %cst_7 {dimension_numbers = #tpu.dot_dimension_numbers<[2], [1], [1], [2], [0, 0, 0, 1, 1, 2], [0], [0]>} : vector<2x8x8xf32>, vector<2x8x32xf32>, vector<2x8x32xf32> -> vector<2x8x32xf32>
    "tpu.trace_stop"() : () -> ()
    %c0_8 = arith.constant 0 : index
    %c0_9 = arith.constant 0 : index
    %13 = vector.load %arg4[%c0_8, %c0_9] : memref<32x64xf32, #tpu.memory_space<vmem>>, vector<32x32xf32>
    %c0_10 = arith.constant 0 : index
    %c32 = arith.constant 32 : index
    %14 = vector.load %arg4[%c0_10, %c32] : memref<32x64xf32, #tpu.memory_space<vmem>>, vector<32x32xf32>
    %15 = vector.shape_cast %12 : vector<2x8x32xf32> to vector<16x32xf32>
    %16 = vector.shape_cast %0 : vector<2x8x32xf32> to vector<16x32xf32>
    %cst_11 = arith.constant dense<0.000000e+00> : vector<16x32xf32>
    %17 = tpu.matmul %15, %13, %cst_11 {dimension_numbers = #tpu.dot_dimension_numbers<[1], [1], [0], [0], [0, 0, 1, 0], [], []>} : vector<16x32xf32>, vector<32x32xf32>, vector<16x32xf32> -> vector<16x32xf32>
    %cst_12 = arith.constant dense<0.000000e+00> : vector<16x32xf32>
    %18 = tpu.matmul %16, %14, %cst_12 {dimension_numbers = #tpu.dot_dimension_numbers<[1], [1], [0], [0], [0, 0, 1, 0], [], []>} : vector<16x32xf32>, vector<32x32xf32>, vector<16x32xf32> -> vector<16x32xf32>
    %19 = arith.addf %17, %18 : vector<16x32xf32>
    %20 = math.tanh %19 : vector<16x32xf32>
    %21 = vector.extract_strided_slice %20 {offsets = [0, 0], sizes = [8, 32], strides = [1, 1]} : vector<16x32xf32> to vector<8x32xf32>
    %c0_13 = arith.constant 0 : index
    %c0_14 = arith.constant 0 : index
    %22 = vector.load %arg5[%c0_13, %c0_14] : memref<8x64xf32, #tpu.memory_space<vmem>>, vector<8x32xf32>
    tpu.vector_store %arg5[%c0_13, %c0_14], %21 {strides = array<i32>} : memref<8x64xf32, #tpu.memory_space<vmem>>, vector<8x32xf32>,
    %23 = vector.extract_strided_slice %20 {offsets = [8, 0], sizes = [8, 32], strides = [1, 1]} : vector<16x32xf32> to vector<8x32xf32>
    %c0_15 = arith.constant 0 : index
    %c32_16 = arith.constant 32 : index
    %24 = vector.load %arg5[%c0_15, %c32_16] : memref<8x64xf32, #tpu.memory_space<vmem>>, vector<8x32xf32>
    tpu.vector_store %arg5[%c0_15, %c32_16], %23 {strides = array<i32>} : memref<8x64xf32, #tpu.memory_space<vmem>>, vector<8x32xf32>,
    %25 = vector.extract_strided_slice %11 {offsets = [0, 0, 0], sizes = [1, 8, 8], strides = [1, 1, 1]} : vector<2x8x8xf32> to vector<1x8x8xf32>
    %26 = vector.shape_cast %25 : vector<1x8x8xf32> to vector<8x8xf32>
    %c0_17 = arith.constant 0 : index
    %c0_18 = arith.constant 0 : index
    %27 = vector.load %arg6[%c0_17, %c0_18] : memref<8x16xf32, #tpu.memory_space<vmem>>, vector<8x8xf32>
    tpu.vector_store %arg6[%c0_17, %c0_18], %26 {strides = array<i32>} : memref<8x16xf32, #tpu.memory_space<vmem>>, vector<8x8xf32>,
    %28 = vector.extract_strided_slice %11 {offsets = [1, 0, 0], sizes = [1, 8, 8], strides = [1, 1, 1]} : vector<2x8x8xf32> to vector<1x8x8xf32>
    %29 = vector.shape_cast %28 : vector<1x8x8xf32> to vector<8x8xf32>
    %c0_19 = arith.constant 0 : index
    %c8 = arith.constant 8 : index
    %30 = vector.load %arg6[%c0_19, %c8] : memref<8x16xf32, #tpu.memory_space<vmem>>, vector<8x8xf32>
    tpu.vector_store %arg6[%c0_19, %c8], %29 {strides = array<i32>} : memref<8x16xf32, #tpu.memory_space<vmem>>, vector<8x8xf32>,
    return
  }
  func.func @transform_0(%arg0: i32, %arg1: i32) -> (i32, i32, i32) {
    %c0_i32 = arith.constant 0 : i32
    %c0_i32_0 = arith.constant 0 : i32
    return %arg0, %arg1, %c0_i32 : i32, i32, i32
  }
  func.func @transform_1(%arg0: i32, %arg1: i32) -> (i32, i32, i32) {
    %c0_i32 = arith.constant 0 : i32
    %c0_i32_0 = arith.constant 0 : i32
    %c0_i32_1 = arith.constant 0 : i32
    %c0_i32_2 = arith.constant 0 : i32
    return %c0_i32, %c0_i32_0, %c0_i32_1 : i32, i32, i32
  }
  func.func @transform_2(%arg0: i32, %arg1: i32) -> (i32, i32) {
    %c0_i32 = arith.constant 0 : i32
    %c0_i32_0 = arith.constant 0 : i32
    %c0_i32_1 = arith.constant 0 : i32
    return %c0_i32, %c0_i32_0 : i32, i32
  }
  func.func @transform_3(%arg0: i32, %arg1: i32) -> (i32, i32) {
    %c0_i32 = arith.constant 0 : i32
    return %arg1, %arg0 : i32, i32
  }
  func.func @transform_4(%arg0: i32, %arg1: i32) -> (i32, i32) {
    %c0_i32 = arith.constant 0 : i32
    return %arg1, %arg0 : i32, i32
  }
}

</mosaic_0001>

<llo_original>
// kernel: global_attention_dot.1
$region0: #{global_attention_dot.1}
  #allocation0 [shape = 'u32[]', space=smem, size = 0x4, offset = 0x4, fixed_abs, tag = 'smem constant byte address 0x4 - core index']
  #allocation1 [shape = 'u32[144,128]{1,0:T(1,128)}', space=vmem, size = 0x12000, scoped, tag = 'internal scratch']
  %s0 = inlined_call_operand.hbm [shape: f32[2,8,32], index: 0, kind: input, shape index: {}]
  %s1 = inlined_call_operand.hbm [shape: f32[2,8,32], index: 1, kind: input, shape index: {}]
  %s2 = inlined_call_operand.hbm [shape: f32[32,64], index: 2, kind: input, shape index: {}]
  %s3 = inlined_call_operand.vmem [shape: f32[8,64], index: 3, kind: output, shape index: {0}]
  %s4 = inlined_call_operand.vmem [shape: f32[8,16], index: 4, kind: output, shape index: {1}]
  %5 = xla_tuple %s3, %s4
  %s6 = sld [smem:[#allocation0]]
  $region42: #{global_attention_dot.1} parent=0
    _
  %s8 = ssub.s32 1, %s6
  %s9 = scalar_select 0, %s8, %s6
  $region1: #{global_attention_dot.1} parent=0
    #allocation2 [shape = 'u8[8192]{0}', space=vmem, size = 0x2000, scoped, tag = 'input window, operand 0, single buffered']
    #allocation3 [shape = 's32[1]{0}', space=sflag, size = 0x4, scoped, tag = 'scoped memory for global_attention_dot.1']
    #allocation4 [shape = 'u8[8192]{0}', space=vmem, size = 0x2000, scoped, tag = 'input window, operand 1, single buffered']
    #allocation5 [shape = 's32[1]{0}', space=sflag, size = 0x4, scoped, tag = 'scoped memory for global_attention_dot.1']
    #allocation6 [shape = 'u8[16384]{0}', space=vmem, size = 0x4000, scoped, tag = 'input window, operand 2, single buffered']
    %10 = vsyncpa [#allocation3], 0
    %11 = vsyncpa [#allocation5], 0
    // Predicated region
    $region2: #{global_attention_dot.1} parent=1 // pred_check
      _
    $region3: #{global_attention_dot.1} parent=1 // pred_check_branch
      %13 = sbr.rel (0) target = $region5
    $region4: #{global_attention_dot.1} parent=1 // pred_region
      %s15 = ssub.s32 256, 256
      %16 = vsyncadd [#allocation3], %s15
      %s17 = sshll.u32 [#allocation2], 4
      %s18 = int_to_ptr.vmem [resolvable:$true] %s17
      %23 = dma.hbm_to_vmem [thread:$0]  %s0, 256, %s18, [#allocation3], 128, 128, 8
    $region5: #{global_attention_dot.1} parent=1 // pred_fallthru
      _
    // Predicated region
    $region6: #{global_attention_dot.1} parent=1 // pred_check
      _
    $region7: #{global_attention_dot.1} parent=1 // pred_check_branch
      %25 = sbr.rel (0) target = $region9
    $region8: #{global_attention_dot.1} parent=1 // pred_region
      %s27 = ssub.s32 256, 256
      %28 = vsyncadd [#allocation5], %s27
      %s29 = sshll.u32 [#allocation4], 4
      %s30 = int_to_ptr.vmem [resolvable:$true] %s29
      %35 = dma.hbm_to_vmem [thread:$0]  %s1, 256, %s30, [#allocation5], 128, 128, 8
    $region9: #{global_attention_dot.1} parent=1 // pred_fallthru
      _
    // Predicated region
    $region10: #{global_attention_dot.1} parent=1 // pred_check
      _
    $region11: #{global_attention_dot.1} parent=1 // pred_check_branch
      %37 = sbr.rel (0) target = $region13
    $region12: #{global_attention_dot.1} parent=1 // pred_region
      %s39 = ssub.s32 512, 512
      %40 = vsyncadd [#allocation5], %s39
      %s41 = sshll.u32 [#allocation6], 4
      %s42 = int_to_ptr.vmem [resolvable:$true] %s41
      %47 = dma.hbm_to_vmem [thread:$0]  %s2, 512, %s42, [#allocation5], 128, 128, 8
    $region13: #{global_attention_dot.1} parent=1 // pred_fallthru
      _
    // Predicated region
    $region14: #{global_attention_dot.1} parent=1 // pred_check
      _
    $region15: #{global_attention_dot.1} parent=1 // pred_check_branch
      %49 = sbr.rel (0) target = $region17
    $region16: #{global_attention_dot.1} parent=1 // pred_region
      %50 = dma.done [#allocation3], 256
    $region17: #{global_attention_dot.1} parent=1 // pred_fallthru
      _
    // Predicated region
    $region18: #{global_attention_dot.1} parent=1 // pred_check
      _
    $region19: #{global_attention_dot.1} parent=1 // pred_check_branch
      %52 = sbr.rel (0) target = $region21
    $region20: #{global_attention_dot.1} parent=1 // pred_region
      %53 = dma.done [#allocation5], 256
    $region21: #{global_attention_dot.1} parent=1 // pred_fallthru
      _
    // Predicated region
    $region22: #{global_attention_dot.1} parent=1 // pred_check
      _
    $region23: #{global_attention_dot.1} parent=1 // pred_check_branch
      %55 = sbr.rel (0) target = $region25
    $region24: #{global_attention_dot.1} parent=1 // pred_region
      %56 = dma.done [#allocation5], 512
    $region25: #{global_attention_dot.1} parent=1 // pred_fallthru
      _
    %v57 = vld [vmem:[#allocation2] sm:$0xff]
    %v58 = vld [vmem:[#allocation2 + $0x8] sm:$0xff]
    %v59 = vld [vmem:[#allocation4] sm:$0xff]
    %v60 = vld [vmem:[#allocation4 + $0x8] sm:$0xff]
    %vm61 = vcmask 261120
    %v63 = vsel %vm61, %v57, 0
    %v66 = vsel %vm61, %v59, 0
    %68 = vmatprep.subr.mxu0 0.0
    %69 = vmatpush1.xpose.msra.mxu0 %v66
    %70 = vmatprep.subr.mxu0 0.0
    %71 = vmatpush1.xpose.msra.mxu0 0.0
    %72 = vmatprep.subr.mxu0 0.0
    %73 = vmatpush1.xpose.msra.mxu0 0.0
    %74 = vmatprep.subr.mxu0 0.0
    %75 = vmatpush1.xpose.msra.mxu0 0.0
    %76 = vmatprep.subr.mxu0 0.0
    %77 = vmatpush1.xpose.msra.mxu0 0.0
    %78 = vmatprep.subr.mxu0 0.0
    %79 = vmatpush1.xpose.msra.mxu0 0.0
    %80 = vmatprep.subr.mxu0 0.0
    %81 = vmatpush1.xpose.msra.mxu0 0.0
    %82 = vmatprep.subr.mxu0 0.0
    %83 = vmatpush1.xpose.msra.mxu0 0.0
    %84 = vmatprep.subr.mxu0 0.0
    %85 = vmatpush1.xpose.msra.mxu0 0.0
    %86 = vmatprep.subr.mxu0 0.0
    %87 = vmatpush1.xpose.msra.mxu0 0.0
    %88 = vmatprep.subr.mxu0 0.0
    %89 = vmatpush1.xpose.msra.mxu0 0.0
    %90 = vmatprep.subr.mxu0 0.0
    %91 = vmatpush1.xpose.msra.mxu0 0.0
    %92 = vmatprep.subr.mxu0 0.0
    %93 = vmatpush1.xpose.msra.mxu0 0.0
    %94 = vmatprep.subr.mxu0 0.0
    %95 = vmatpush1.xpose.msra.mxu0 0.0
    %96 = vmatprep.subr.mxu0 0.0
    %97 = vmatpush1.xpose.msra.mxu0 0.0
    %98 = vmatprep.subr.mxu0 0.0
    %99 = vmatpush1.xpose.msra.mxu0 0.0
    %100 = vmatprep.subr.mxu0 0.0
    %101 = vmatpush1.xpose.msra.mxu0 0.0
    %102 = vmatprep.subr.mxu0 0.0
    %103 = vmatpush1.xpose.msra.mxu0 0.0
    %104 = vmatprep.subr.mxu0 0.0
    %105 = vmatpush1.xpose.msra.mxu0 0.0
    %106 = vmatprep.subr.mxu0 0.0
    %107 = vmatpush1.xpose.msra.mxu0 0.0
    %108 = vmatprep.subr.mxu0 0.0
    %109 = vmatpush1.xpose.msra.mxu0 0.0
    %110 = vmatprep.subr.mxu0 0.0
    %111 = vmatpush1.xpose.msra.mxu0 0.0
    %112 = vmatprep.subr.mxu0 0.0
    %113 = vmatpush1.xpose.msra.mxu0 0.0
    %114 = vmatprep.subr.mxu0 0.0
    %115 = vmatpush1.xpose.msra.mxu0 0.0
    %116 = vmatprep.subr.mxu0 0.0
    %117 = vmatpush1.xpose.msra.mxu0 0.0
    %118 = vmatprep.subr.mxu0 0.0
    %119 = vmatpush1.xpose.msra.mxu0 0.0
    %120 = vmatprep.subr.mxu0 0.0
    %121 = vmatpush1.xpose.msra.mxu0 0.0
    %122 = vmatprep.subr.mxu0 0.0
    %123 = vmatpush1.xpose.msra.mxu0 0.0
    %124 = vmatprep.subr.mxu0 0.0
    %125 = vmatpush1.xpose.msra.mxu0 0.0
    %126 = vmatprep.subr.mxu0 0.0
    %127 = vmatpush1.xpose.msra.mxu0 0.0
    %128 = vmatprep.subr.mxu0 0.0
    %129 = vmatpush1.xpose.msra.mxu0 0.0
    %130 = vmatprep.subr.mxu0 0.0
    %131 = vmatpush1.xpose.msra.mxu0 0.0
    %132 = vmatprep.mubr.f32.mxu0 0.0
    %133 = vmatmul.mubr.f32.gmra.mrb[0].mxu0 %v63
    %v134 = vpop.f32.mrb[0].mxu0
    %v135 = vadd.f32 0.0, %v134
    %v136 = vpop.f32.mrb[0].mxu0
    %137 = vdwg.mxu0
    %v139 = vsel %vm61, %v58, 0
    %v142 = vsel %vm61, %v60, 0
    %144 = vmatprep.subr.mxu0 0.0
    %145 = vmatpush1.xpose.msra.mxu0 %v142
    %146 = vmatprep.subr.mxu0 0.0
    %147 = vmatpush1.xpose.msra.mxu0 0.0
    %148 = vmatprep.subr.mxu0 0.0
    %149 = vmatpush1.xpose.msra.mxu0 0.0
    %150 = vmatprep.subr.mxu0 0.0
    %151 = vmatpush1.xpose.msra.mxu0 0.0
    %152 = vmatprep.subr.mxu0 0.0
    %153 = vmatpush1.xpose.msra.mxu0 0.0
    %154 = vmatprep.subr.mxu0 0.0
    %155 = vmatpush1.xpose.msra.mxu0 0.0
    %156 = vmatprep.subr.mxu0 0.0
    %157 = vmatpush1.xpose.msra.mxu0 0.0
    %158 = vmatprep.subr.mxu0 0.0
    %159 = vmatpush1.xpose.msra.mxu0 0.0
    %160 = vmatprep.subr.mxu0 0.0
    %161 = vmatpush1.xpose.msra.mxu0 0.0
    %162 = vmatprep.subr.mxu0 0.0
    %163 = vmatpush1.xpose.msra.mxu0 0.0
    %164 = vmatprep.subr.mxu0 0.0
    %165 = vmatpush1.xpose.msra.mxu0 0.0
    %166 = vmatprep.subr.mxu0 0.0
    %167 = vmatpush1.xpose.msra.mxu0 0.0
    %168 = vmatprep.subr.mxu0 0.0
    %169 = vmatpush1.xpose.msra.mxu0 0.0
    %170 = vmatprep.subr.mxu0 0.0
    %171 = vmatpush1.xpose.msra.mxu0 0.0
    %172 = vmatprep.subr.mxu0 0.0
    %173 = vmatpush1.xpose.msra.mxu0 0.0
    %174 = vmatprep.subr.mxu0 0.0
    %175 = vmatpush1.xpose.msra.mxu0 0.0
    %176 = vmatprep.subr.mxu0 0.0
    %177 = vmatpush1.xpose.msra.mxu0 0.0
    %178 = vmatprep.subr.mxu0 0.0
    %179 = vmatpush1.xpose.msra.mxu0 0.0
    %180 = vmatprep.subr.mxu0 0.0
    %181 = vmatpush1.xpose.msra.mxu0 0.0
    %182 = vmatprep.subr.mxu0 0.0
    %183 = vmatpush1.xpose.msra.mxu0 0.0
    %184 = vmatprep.subr.mxu0 0.0
    %185 = vmatpush1.xpose.msra.mxu0 0.0
    %186 = vmatprep.subr.mxu0 0.0
    %187 = vmatpush1.xpose.msra.mxu0 0.0
    %188 = vmatprep.subr.mxu0 0.0
    %189 = vmatpush1.xpose.msra.mxu0 0.0
    %190 = vmatprep.subr.mxu0 0.0
    %191 = vmatpush1.xpose.msra.mxu0 0.0
    %192 = vmatprep.subr.mxu0 0.0
    %193 = vmatpush1.xpose.msra.mxu0 0.0
    %194 = vmatprep.subr.mxu0 0.0
    %195 = vmatpush1.xpose.msra.mxu0 0.0
    %196 = vmatprep.subr.mxu0 0.0
    %197 = vmatpush1.xpose.msra.mxu0 0.0
    %198 = vmatprep.subr.mxu0 0.0
    %199 = vmatpush1.xpose.msra.mxu0 0.0
    %200 = vmatprep.subr.mxu0 0.0
    %201 = vmatpush1.xpose.msra.mxu0 0.0
    %202 = vmatprep.subr.mxu0 0.0
    %203 = vmatpush1.xpose.msra.mxu0 0.0
    %204 = vmatprep.subr.mxu0 0.0
    %205 = vmatpush1.xpose.msra.mxu0 0.0
    %206 = vmatprep.subr.mxu0 0.0
    %207 = vmatpush1.xpose.msra.mxu0 0.0
    %208 = vmatprep.mubr.f32.mxu0 0.0
    %209 = vmatmul.mubr.f32.gmra.mrb[0].mxu0 %v139
    %v210 = vpop.f32.mrb[0].mxu0
    %v211 = vadd.f32 0.0, %v210
    %v212 = vpop.f32.mrb[0].mxu0
    %213 = vdwg.mxu0
    %vm214 = vcmask 64512
    %v215 = vsel %vm214, %v135, -inf
    %216 = vmax.xlane.f32.xlu0 %v215
    %v217 = vpop.xlane.xlu0 %216
    %v218 = vsel %vm214, %v211, -inf
    %219 = vmax.xlane.f32.xlu0 %v218
    %v220 = vpop.xlane.xlu0 %219
    %v221 = vsub.f32 %v135, %v217
    %v222 = vsub.f32 %v211, %v220
    %v223 = vmul.f32 %v221, 1.442695
    %v224 = vpow.pop %v223
    %v225 = vmul.f32 %v222, 1.442695
    %v226 = vpow.pop %v225
    %v227 = vsel %vm214, %v224, 0.0
    %228 = vadd.xlane.f32.xlu0 %v227
    %v229 = vpop.xlane.xlu0 %228
    %v230 = vsel %vm214, %v226, 0.0
    %231 = vadd.xlane.f32.xlu0 %v230
    %v232 = vpop.xlane.xlu0 %231
    %v233 = vrcp.pop %v229
    %v234 = vmul.f32 %v224, %v233
    %v235 = vrcp.pop %v232
    %v236 = vmul.f32 %v226, %v235
    %v238 = vsel %vm214, %v234, 0
    %240 = vmatprep.subr.mxu0 0.0
    %241 = vmatpush1.msra.mxu0 %v59
    %242 = vmatprep.subr.mxu0 0.0
    %243 = vmatpush1.msra.mxu0 0.0
    %244 = vmatprep.subr.mxu0 0.0
    %245 = vmatpush1.msra.mxu0 0.0
    %246 = vmatprep.subr.mxu0 0.0
    %247 = vmatpush1.msra.mxu0 0.0
    %248 = vmatprep.subr.mxu0 0.0
    %249 = vmatpush1.msra.mxu0 0.0
    %250 = vmatprep.subr.mxu0 0.0
    %251 = vmatpush1.msra.mxu0 0.0
    %252 = vmatprep.subr.mxu0 0.0
    %253 = vmatpush1.msra.mxu0 0.0
    %254 = vmatprep.subr.mxu0 0.0
    %255 = vmatpush1.msra.mxu0 0.0
    %256 = vmatprep.subr.mxu0 0.0
    %257 = vmatpush1.msra.mxu0 0.0
    %258 = vmatprep.subr.mxu0 0.0
    %259 = vmatpush1.msra.mxu0 0.0
    %260 = vmatprep.subr.mxu0 0.0
    %261 = vmatpush1.msra.mxu0 0.0
    %262 = vmatprep.subr.mxu0 0.0
    %263 = vmatpush1.msra.mxu0 0.0
    %264 = vmatprep.subr.mxu0 0.0
    %265 = vmatpush1.msra.mxu0 0.0
    %266 = vmatprep.subr.mxu0 0.0
    %267 = vmatpush1.msra.mxu0 0.0
    %268 = vmatprep.subr.mxu0 0.0
    %269 = vmatpush1.msra.mxu0 0.0
    %270 = vmatprep.subr.mxu0 0.0
    %271 = vmatpush1.msra.mxu0 0.0
    %272 = vmatprep.subr.mxu0 0.0
    %273 = vmatpush1.msra.mxu0 0.0
    %274 = vmatprep.subr.mxu0 0.0
    %275 = vmatpush1.msra.mxu0 0.0
    %276 = vmatprep.subr.mxu0 0.0
    %277 = vmatpush1.msra.mxu0 0.0
    %278 = vmatprep.subr.mxu0 0.0
    %279 = vmatpush1.msra.mxu0 0.0
    %280 = vmatprep.subr.mxu0 0.0
    %281 = vmatpush1.msra.mxu0 0.0
    %282 = vmatprep.subr.mxu0 0.0
    %283 = vmatpush1.msra.mxu0 0.0
    %284 = vmatprep.subr.mxu0 0.0
    %285 = vmatpush1.msra.mxu0 0.0
    %286 = vmatprep.subr.mxu0 0.0
    %287 = vmatpush1.msra.mxu0 0.0
    %288 = vmatprep.subr.mxu0 0.0
    %289 = vmatpush1.msra.mxu0 0.0
    %290 = vmatprep.subr.mxu0 0.0
    %291 = vmatpush1.msra.mxu0 0.0
    %292 = vmatprep.subr.mxu0 0.0
    %293 = vmatpush1.msra.mxu0 0.0
    %294 = vmatprep.subr.mxu0 0.0
    %295 = vmatpush1.msra.mxu0 0.0
    %296 = vmatprep.subr.mxu0 0.0
    %297 = vmatpush1.msra.mxu0 0.0
    %298 = vmatprep.subr.mxu0 0.0
    %299 = vmatpush1.msra.mxu0 0.0
    %300 = vmatprep.subr.mxu0 0.0
    %301 = vmatpush1.msra.mxu0 0.0
    %302 = vmatprep.subr.mxu0 0.0
    %303 = vmatpush1.msra.mxu0 0.0
    %304 = vmatprep.mubr.f32.mxu0 0.0
    %305 = vmatmul.mubr.f32.gmra.mrb[0].mxu0 %v238
    %v306 = vpop.f32.mrb[0].mxu0
    %v307 = vadd.f32 0.0, %v306
    %v308 = vpop.f32.mrb[0].mxu0
    %309 = vdwg.mxu0
    %v311 = vsel %vm214, %v236, 0
    %313 = vmatprep.subr.mxu0 0.0
    %314 = vmatpush1.msra.mxu0 %v60
    %315 = vmatprep.subr.mxu0 0.0
    %316 = vmatpush1.msra.mxu0 0.0
    %317 = vmatprep.subr.mxu0 0.0
    %318 = vmatpush1.msra.mxu0 0.0
    %319 = vmatprep.subr.mxu0 0.0
    %320 = vmatpush1.msra.mxu0 0.0
    %321 = vmatprep.subr.mxu0 0.0
    %322 = vmatpush1.msra.mxu0 0.0
    %323 = vmatprep.subr.mxu0 0.0
    %324 = vmatpush1.msra.mxu0 0.0
    %325 = vmatprep.subr.mxu0 0.0
    %326 = vmatpush1.msra.mxu0 0.0
    %327 = vmatprep.subr.mxu0 0.0
    %328 = vmatpush1.msra.mxu0 0.0
    %329 = vmatprep.subr.mxu0 0.0
    %330 = vmatpush1.msra.mxu0 0.0
    %331 = vmatprep.subr.mxu0 0.0
    %332 = vmatpush1.msra.mxu0 0.0
    %333 = vmatprep.subr.mxu0 0.0
    %334 = vmatpush1.msra.mxu0 0.0
    %335 = vmatprep.subr.mxu0 0.0
    %336 = vmatpush1.msra.mxu0 0.0
    %337 = vmatprep.subr.mxu0 0.0
    %338 = vmatpush1.msra.mxu0 0.0
    %339 = vmatprep.subr.mxu0 0.0
    %340 = vmatpush1.msra.mxu0 0.0
    %341 = vmatprep.subr.mxu0 0.0
    %342 = vmatpush1.msra.mxu0 0.0
    %343 = vmatprep.subr.mxu0 0.0
    %344 = vmatpush1.msra.mxu0 0.0
    %345 = vmatprep.subr.mxu0 0.0
    %346 = vmatpush1.msra.mxu0 0.0
    %347 = vmatprep.subr.mxu0 0.0
    %348 = vmatpush1.msra.mxu0 0.0
    %349 = vmatprep.subr.mxu0 0.0
    %350 = vmatpush1.msra.mxu0 0.0
    %351 = vmatprep.subr.mxu0 0.0
    %352 = vmatpush1.msra.mxu0 0.0
    %353 = vmatprep.subr.mxu0 0.0
    %354 = vmatpush1.msra.mxu0 0.0
    %355 = vmatprep.subr.mxu0 0.0
    %356 = vmatpush1.msra.mxu0 0.0
    %357 = vmatprep.subr.mxu0 0.0
    %358 = vmatpush1.msra.mxu0 0.0
    %359 = vmatprep.subr.mxu0 0.0
    %360 = vmatpush1.msra.mxu0 0.0
    %361 = vmatprep.subr.mxu0 0.0
    %362 = vmatpush1.msra.mxu0 0.0
    %363 = vmatprep.subr.mxu0 0.0
    %364 = vmatpush1.msra.mxu0 0.0
    %365 = vmatprep.subr.mxu0 0.0
    %366 = vmatpush1.msra.mxu0 0.0
    %367 = vmatprep.subr.mxu0 0.0
    %368 = vmatpush1.msra.mxu0 0.0
    %369 = vmatprep.subr.mxu0 0.0
    %370 = vmatpush1.msra.mxu0 0.0
    %371 = vmatprep.subr.mxu0 0.0
    %372 = vmatpush1.msra.mxu0 0.0
    %373 = vmatprep.subr.mxu0 0.0
    %374 = vmatpush1.msra.mxu0 0.0
    %375 = vmatprep.subr.mxu0 0.0
    %376 = vmatpush1.msra.mxu0 0.0
    %377 = vmatprep.mubr.f32.mxu0 0.0
    %378 = vmatmul.mubr.f32.gmra.mrb[0].mxu0 %v311
    %v379 = vpop.f32.mrb[0].mxu0
    %v380 = vadd.f32 0.0, %v379
    %v381 = vpop.f32.mrb[0].mxu0
    %382 = vdwg.mxu0
    %v383 = vld [vmem:[#allocation6] sm:$0xff]
    %v384 = vld [vmem:[#allocation6 + $0x8] sm:$0xff]
    %v385 = vld [vmem:[#allocation6 + $0x10] sm:$0xff]
    %v386 = vld [vmem:[#allocation6 + $0x18] sm:$0xff]
    %391 = vrot.lane.b32.xlu0 %v383, 96
    %v392 = vpop.permute.xlu0 %391
    %393 = vrot.lane.b32.xlu0 %v384, 96
    %v394 = vpop.permute.xlu0 %393
    %395 = vrot.lane.b32.xlu0 %v385, 96
    %v396 = vpop.permute.xlu0 %395
    %397 = vrot.lane.b32.xlu0 %v386, 96
    %v398 = vpop.permute.xlu0 %397
    %v399 = vsel %vm61, %v392, 0
    %v401 = vsel %vm61, %v394, 0
    %v403 = vsel %vm61, %v396, 0
    %v405 = vsel %vm61, %v398, 0
    %407 = vmatprep.subr.mxu0 0.0
    %408 = vmatpush1.xpose.msra.mxu0 %v399
    %409 = vmatprep.subr.mxu0 0.0
    %410 = vmatpush1.xpose.msra.mxu0 %v401
    %411 = vmatprep.subr.mxu0 0.0
    %412 = vmatpush1.xpose.msra.mxu0 %v403
    %413 = vmatprep.subr.mxu0 0.0
    %414 = vmatpush1.xpose.msra.mxu0 %v405
    %415 = vmatprep.subr.mxu0 0.0
    %416 = vmatpush1.xpose.msra.mxu0 0.0
    %417 = vmatprep.subr.mxu0 0.0
    %418 = vmatpush1.xpose.msra.mxu0 0.0
    %419 = vmatprep.subr.mxu0 0.0
    %420 = vmatpush1.xpose.msra.mxu0 0.0
    %421 = vmatprep.subr.mxu0 0.0
    %422 = vmatpush1.xpose.msra.mxu0 0.0
    %423 = vmatprep.subr.mxu0 0.0
    %424 = vmatpush1.xpose.msra.mxu0 0.0
    %425 = vmatprep.subr.mxu0 0.0
    %426 = vmatpush1.xpose.msra.mxu0 0.0
    %427 = vmatprep.subr.mxu0 0.0
    %428 = vmatpush1.xpose.msra.mxu0 0.0
    %429 = vmatprep.subr.mxu0 0.0
    %430 = vmatpush1.xpose.msra.mxu0 0.0
    %431 = vmatprep.subr.mxu0 0.0
    %432 = vmatpush1.xpose.msra.mxu0 0.0
    %433 = vmatprep.subr.mxu0 0.0
    %434 = vmatpush1.xpose.msra.mxu0 0.0
    %435 = vmatprep.subr.mxu0 0.0
    %436 = vmatpush1.xpose.msra.mxu0 0.0
    %437 = vmatprep.subr.mxu0 0.0
    %438 = vmatpush1.xpose.msra.mxu0 0.0
    %439 = vmatprep.subr.mxu0 0.0
    %440 = vmatpush1.xpose.msra.mxu0 0.0
    %441 = vmatprep.subr.mxu0 0.0
    %442 = vmatpush1.xpose.msra.mxu0 0.0
    %443 = vmatprep.subr.mxu0 0.0
    %444 = vmatpush1.xpose.msra.mxu0 0.0
    %445 = vmatprep.subr.mxu0 0.0
    %446 = vmatpush1.xpose.msra.mxu0 0.0
    %447 = vmatprep.subr.mxu0 0.0
    %448 = vmatpush1.xpose.msra.mxu0 0.0
    %449 = vmatprep.subr.mxu0 0.0
    %450 = vmatpush1.xpose.msra.mxu0 0.0
    %451 = vmatprep.subr.mxu0 0.0
    %452 = vmatpush1.xpose.msra.mxu0 0.0
    %453 = vmatprep.subr.mxu0 0.0
    %454 = vmatpush1.xpose.msra.mxu0 0.0
    %455 = vmatprep.subr.mxu0 0.0
    %456 = vmatpush1.xpose.msra.mxu0 0.0
    %457 = vmatprep.subr.mxu0 0.0
    %458 = vmatpush1.xpose.msra.mxu0 0.0
    %459 = vmatprep.subr.mxu0 0.0
    %460 = vmatpush1.xpose.msra.mxu0 0.0
    %461 = vmatprep.subr.mxu0 0.0
    %462 = vmatpush1.xpose.msra.mxu0 0.0
    %463 = vmatprep.subr.mxu0 0.0
    %464 = vmatpush1.xpose.msra.mxu0 0.0
    %465 = vmatprep.subr.mxu0 0.0
    %466 = vmatpush1.xpose.msra.mxu0 0.0
    %467 = vmatprep.subr.mxu0 0.0
    %468 = vmatpush1.xpose.msra.mxu0 0.0
    %469 = vmatprep.subr.mxu0 0.0
    %470 = vmatpush1.xpose.msra.mxu0 0.0
    %471 = vmatprep.mubr.f32.mxu0 0.0
    %472 = vmatmul.mubr.f32.gmra.mrb[0].mxu0 %v63
    %v473 = vpop.f32.mrb[0].mxu0
    %v474 = vadd.f32 0.0, %v473
    %v475 = vpop.f32.mrb[0].mxu0
    %476 = vmatprep.mubr.f32.mxu0 0.0
    %477 = vmatmul.mubr.f32.gmra.mrb[0].mxu0 %v139
    %v478 = vpop.f32.mrb[0].mxu0
    %v479 = vadd.f32 0.0, %v478
    %v480 = vpop.f32.mrb[0].mxu0
    %481 = vdwg.mxu0
    %v483 = vsel %vm61, %v307, 0
    %v486 = vsel %vm61, %v380, 0
    %v488 = vsel %vm61, %v383, 0
    %v490 = vsel %vm61, %v384, 0
    %v492 = vsel %vm61, %v385, 0
    %v494 = vsel %vm61, %v386, 0
    %496 = vmatprep.subr.mxu0 0.0
    %497 = vmatpush1.xpose.msra.mxu0 %v488
    %498 = vmatprep.subr.mxu0 0.0
    %499 = vmatpush1.xpose.msra.mxu0 %v490
    %500 = vmatprep.subr.mxu0 0.0
    %501 = vmatpush1.xpose.msra.mxu0 %v492
    %502 = vmatprep.subr.mxu0 0.0
    %503 = vmatpush1.xpose.msra.mxu0 %v494
    %504 = vmatprep.subr.mxu0 0.0
    %505 = vmatpush1.xpose.msra.mxu0 0.0
    %506 = vmatprep.subr.mxu0 0.0
    %507 = vmatpush1.xpose.msra.mxu0 0.0
    %508 = vmatprep.subr.mxu0 0.0
    %509 = vmatpush1.xpose.msra.mxu0 0.0
    %510 = vmatprep.subr.mxu0 0.0
    %511 = vmatpush1.xpose.msra.mxu0 0.0
    %512 = vmatprep.subr.mxu0 0.0
    %513 = vmatpush1.xpose.msra.mxu0 0.0
    %514 = vmatprep.subr.mxu0 0.0
    %515 = vmatpush1.xpose.msra.mxu0 0.0
    %516 = vmatprep.subr.mxu0 0.0
    %517 = vmatpush1.xpose.msra.mxu0 0.0
    %518 = vmatprep.subr.mxu0 0.0
    %519 = vmatpush1.xpose.msra.mxu0 0.0
    %520 = vmatprep.subr.mxu0 0.0
    %521 = vmatpush1.xpose.msra.mxu0 0.0
    %522 = vmatprep.subr.mxu0 0.0
    %523 = vmatpush1.xpose.msra.mxu0 0.0
    %524 = vmatprep.subr.mxu0 0.0
    %525 = vmatpush1.xpose.msra.mxu0 0.0
    %526 = vmatprep.subr.mxu0 0.0
    %527 = vmatpush1.xpose.msra.mxu0 0.0
    %528 = vmatprep.subr.mxu0 0.0
    %529 = vmatpush1.xpose.msra.mxu0 0.0
    %530 = vmatprep.subr.mxu0 0.0
    %531 = vmatpush1.xpose.msra.mxu0 0.0
    %532 = vmatprep.subr.mxu0 0.0
    %533 = vmatpush1.xpose.msra.mxu0 0.0
    %534 = vmatprep.subr.mxu0 0.0
    %535 = vmatpush1.xpose.msra.mxu0 0.0
    %536 = vmatprep.subr.mxu0 0.0
    %537 = vmatpush1.xpose.msra.mxu0 0.0
    %538 = vmatprep.subr.mxu0 0.0
    %539 = vmatpush1.xpose.msra.mxu0 0.0
    %540 = vmatprep.subr.mxu0 0.0
    %541 = vmatpush1.xpose.msra.mxu0 0.0
    %542 = vmatprep.subr.mxu0 0.0
    %543 = vmatpush1.xpose.msra.mxu0 0.0
    %544 = vmatprep.subr.mxu0 0.0
    %545 = vmatpush1.xpose.msra.mxu0 0.0
    %546 = vmatprep.subr.mxu0 0.0
    %547 = vmatpush1.xpose.msra.mxu0 0.0
    %548 = vmatprep.subr.mxu0 0.0
    %549 = vmatpush1.xpose.msra.mxu0 0.0
    %550 = vmatprep.subr.mxu0 0.0
    %551 = vmatpush1.xpose.msra.mxu0 0.0
    %552 = vmatprep.subr.mxu0 0.0
    %553 = vmatpush1.xpose.msra.mxu0 0.0
    %554 = vmatprep.subr.mxu0 0.0
    %555 = vmatpush1.xpose.msra.mxu0 0.0
    %556 = vmatprep.subr.mxu0 0.0
    %557 = vmatpush1.xpose.msra.mxu0 0.0
    %558 = vmatprep.subr.mxu0 0.0
    %559 = vmatpush1.xpose.msra.mxu0 0.0
    %560 = vmatprep.mubr.f32.mxu0 0.0
    %561 = vmatmul.mubr.f32.gmra.mrb[0].mxu0 %v483
    %v562 = vpop.f32.mrb[0].mxu0
    %v563 = vadd.f32 %v474, %v562
    %v564 = vpop.f32.mrb[0].mxu0
    %565 = vmatprep.mubr.f32.mxu0 0.0
    %566 = vmatmul.mubr.f32.gmra.mrb[0].mxu0 %v486
    %v567 = vpop.f32.mrb[0].mxu0
    %v568 = vadd.f32 %v479, %v567
    %v569 = vpop.f32.mrb[0].mxu0
    %570 = vdwg.mxu0
    %v571 = vtanh.pop %v563
    %v572 = vtanh.pop %v568
    %573 = vst.msk [vmem:[%s3] sm:$0xff] %vm61, %v571
    %575 = vrot.lane.b32.xlu0 %v572, 32
    %v576 = vpop.permute.xlu0 %575
    %vm578 = vcmask 523520
    %579 = vst.msk [vmem:[%s3] sm:$0xff] %vm578, %v576
    %580 = vst.msk [vmem:[%s4] sm:$0xff] %vm214, %v234
    %581 = vrot.lane.b32.xlu0 %v236, 8
    %v582 = vpop.permute.xlu0 %581
    %vm584 = vcmask 130112
    %585 = vst.msk [vmem:[%s4] sm:$0xff] %vm584, %v582
    // Predicated region
    $region26: #{global_attention_dot.1} parent=1 // pred_check
      _
    $region27: #{global_attention_dot.1} parent=1 // pred_check_branch
      %587 = sbr.rel (0) target = $region29
    $region28: #{global_attention_dot.1} parent=1 // pred_region
      _
    $region29: #{global_attention_dot.1} parent=1 // pred_fallthru
      _
    // Predicated region
    $region30: #{global_attention_dot.1} parent=1 // pred_check
      _
    $region31: #{global_attention_dot.1} parent=1 // pred_check_branch
      %589 = sbr.rel (0) target = $region33
    $region32: #{global_attention_dot.1} parent=1 // pred_region
      _
    $region33: #{global_attention_dot.1} parent=1 // pred_fallthru
      _
    // Predicated region
    $region34: #{global_attention_dot.1} parent=1 // pred_check
      _
    $region35: #{global_attention_dot.1} parent=1 // pred_check_branch
      %591 = sbr.rel (0) target = $region37
    $region36: #{global_attention_dot.1} parent=1 // pred_region
      _
    $region37: #{global_attention_dot.1} parent=1 // pred_fallthru
      _
    // Predicated region
    $region38: #{global_attention_dot.1} parent=1 // pred_check
      _
    $region39: #{global_attention_dot.1} parent=1 // pred_check_branch
      %593 = sbr.rel (0) target = $region41
    $region40: #{global_attention_dot.1} parent=1 // pred_region
      _
    $region41: #{global_attention_dot.1} parent=1 // pred_fallthru
      _
    %594 = vsyncpa [#allocation3], 1
    %595 = vsyncpa [#allocation5], 1

</llo_original>
